<compile_context>
chip_gen: v6e
topology: v6e:2x2x1
jax: 0.10.0
libtpu: 0.0.40
codegen_flags: <defaults>
</compile_context>

<pallas_src>
import math

import jax
import jax.numpy as jnp
from jax.experimental import pallas as pl
from jax.experimental.pallas import tpu as pltpu

LANE = 128
TARGET_BLOCK_BYTES = 1 << 20  # ~1 MiB per stream per grid step -> near HBM roofline


# ----------------------------------------------------------------------------
# Kernel: one (sample, R-chunk) tile of   xo = xp + c * (x - xp)
# perm lives in SMEM (scalar prefetch) and only drives the index_maps;
# coeffs live in SMEM (memory_space=SMEM BlockSpec) and are read as scalars.
# ----------------------------------------------------------------------------
def _mixup_x_kernel(perm_ref, coeff_ref, x_ref, xp_ref, xo_ref):
    del perm_ref  # consumed by the index_maps only
    c = coeff_ref[pl.program_id(0)].astype(jnp.float32)   # scalar from SMEM
    x = x_ref[...].astype(jnp.float32)                    # upcast in registers only
    xp = xp_ref[...].astype(jnp.float32)
    xo_ref[...] = (xp + c * (x - xp)).astype(xo_ref.dtype)


# ----------------------------------------------------------------------------
# Packing: flatten per-sample features to (bs, R, 128), R a full-sublane
# multiple for the dtype (8 f32 / 16 bf16 / 32 int8).  Pads only when needed.
# ----------------------------------------------------------------------------
def _sublane(dtype):
    return max(8, 32 // jnp.dtype(dtype).itemsize)


def _pack(a):
    bs = a.shape[0]
    f = math.prod(a.shape[1:])
    item = jnp.dtype(a.dtype).itemsize
    sub = _sublane(a.dtype)

    r_raw = pl.cdiv(f, LANE)
    # rows per ~TARGET_BLOCK_BYTES block, rounded down to a sublane multiple
    tile_r = max(sub, (TARGET_BLOCK_BYTES // (LANE * item)) // sub * sub)
    if r_raw <= tile_r:
        tile_r = pl.cdiv(r_raw, sub) * sub     # whole sample in one block
        rpad = tile_r
    else:
        rpad = pl.cdiv(r_raw, tile_r) * tile_r

    fpad = rpad * LANE
    flat = a.reshape(bs, f)                    # layout-only
    if fpad != f:
        flat = jnp.pad(flat, ((0, 0), (0, fpad - f)))
    return flat.reshape(bs, rpad, LANE), f, tile_r


# ----------------------------------------------------------------------------
# Mixup core: X mixed by the Pallas kernel, label-sized Y mixed in plain XLA.
# ----------------------------------------------------------------------------
def mixup_apply(X, Y, perm, coeffs, *, mixadd=False):
    bs = X.shape[0]
    orig_x_shape = X.shape

    # Native floating dtype end-to-end; non-float inputs promoted once (torch
    # mixup returns float too).
    if not jnp.issubdtype(X.dtype, jnp.floating):
        X = X.astype(jnp.float32)
    coeffs = coeffs.astype(jnp.float32)
    perm = perm.astype(jnp.int32)

    xb, fx, tile_r = _pack(X)                  # (bs, rpad, 128), native dtype
    _, rpad, _ = xb.shape
    nr = rpad // tile_r

    grid_spec = pltpu.PrefetchScalarGridSpec(
        num_scalar_prefetch=1,                 # perm -> SMEM, drives the gather DMA
        grid=(bs, nr),
        in_specs=[
            pl.BlockSpec(memory_space=pltpu.MemorySpace.SMEM),                     # coeffs
            pl.BlockSpec((1, tile_r, LANE), lambda b, r, perm: (b, r, 0)),         # X[b]
            pl.BlockSpec((1, tile_r, LANE), lambda b, r, perm: (perm[b], r, 0)),   # X[perm[b]]
        ],
        out_specs=pl.BlockSpec((1, tile_r, LANE), lambda b, r, perm: (b, r, 0)),
    )
    xo = pl.pallas_call(
        _mixup_x_kernel,
        out_shape=jax.ShapeDtypeStruct(xb.shape, xb.dtype),
        grid_spec=grid_spec,
        compiler_params=pltpu.CompilerParams(
            dimension_semantics=("parallel", "arbitrary"),   # batch across TCs, R chunks serial
            vmem_limit_bytes=32 * 1024 * 1024),
    )(perm, coeffs, xb, xb)
    Xm = xo.reshape(bs, -1)[:, :fx].reshape(orig_x_shape)    # cheap slice/reshape

    # Y is label-sized (a few KB): compute in plain XLA so the kernel's grid
    # steps carry only the three fat X DMAs.
    y_dt = Y.dtype if jnp.issubdtype(Y.dtype, jnp.floating) else jnp.float32
    Yp = Y[perm]
    if mixadd:
        Ym = jnp.clip(Y.astype(jnp.float32) + Yp.astype(jnp.float32), 0.0, 1.0).astype(y_dt)
    else:
        yc = coeffs.reshape((-1,) + (1,) * (Y.ndim - 1))
        Ym = (Yp.astype(jnp.float32)
              + yc * (Y.astype(jnp.float32) - Yp.astype(jnp.float32))).astype(y_dt)
    return Xm, Ym


# ----------------------------------------------------------------------------
# Module-level forward (mirrors Mixup.forward)
# ----------------------------------------------------------------------------
def mixup_forward(key, X, Y, Z=None, *, mix_beta=1.0, mixadd=False):
    bs = X.shape[0]
    kp, kc = jax.random.split(key)
    perm = jax.random.permutation(kp, bs)                              # torch.randperm
    coeffs = jax.random.beta(kc, mix_beta, mix_beta, shape=(bs,))      # Beta.rsample
    Xm, Ym = mixup_apply(X, Y, perm, coeffs.astype(jnp.float32), mixadd=mixadd)
    if Z is not None:      # torch's `if Z:` is only well-defined for Z=None here
        return Xm, Ym, Z
    return Xm, Ym


# ----------------------------------------------------------------------------
# Pure-JAX reference (spec formula, f32)
# ----------------------------------------------------------------------------
def mixup_ref(X, Y, perm, coeffs, mixadd):
    xc = coeffs.reshape((-1,) + (1,) * (X.ndim - 1))
    yc = coeffs.reshape((-1,) + (1,) * (Y.ndim - 1))
    Xm = xc * X + (1.0 - xc) * X[perm]
    if mixadd:
        Ym = jnp.clip(Y + Y[perm], 0.0, 1.0)
    else:
        Ym = yc * Y + (1.0 - yc) * Y[perm]
    return Xm, Ym


if __name__ == "__main__":
    key = jax.random.PRNGKey(0)
    kx, ky, kp, kc = jax.random.split(key, 4)

    BS = 2
    X = jax.random.normal(kx, (BS, 4, 16, 16), jnp.float32)   # data
    Y = jax.random.uniform(ky, (BS, 8), jnp.float32)          # soft labels in [0,1]

    perm = jax.random.permutation(kp, BS)
    coeffs = jax.random.beta(kc, 1.0, 1.0, shape=(BS,)).astype(jnp.float32)

    mix_fn = jax.jit(mixup_apply, static_argnames=("mixadd",))

    # f32, mixadd=False
    Xm, Ym = jax.block_until_ready(mix_fn(X, Y, perm, coeffs, mixadd=False))
    Xr, Yr = mixup_ref(X, Y, perm, coeffs, False)
    assert Xm.shape == X.shape and Ym.shape == Y.shape and Xm.dtype == X.dtype
    assert bool(jnp.allclose(Xm, Xr, atol=1e-5, rtol=1e-5))
    assert bool(jnp.allclose(Ym, Yr, atol=1e-5, rtol=1e-5))

    # f32, mixadd=True
    Xm2, Ym2 = jax.block_until_ready(mix_fn(X, Y, perm, coeffs, mixadd=True))
    Xr2, Yr2 = mixup_ref(X, Y, perm, coeffs, True)
    assert bool(jnp.allclose(Xm2, Xr2, atol=1e-5, rtol=1e-5))
    assert bool(jnp.allclose(Ym2, Yr2, atol=1e-5, rtol=1e-5))

    # bf16 native-dtype path (no f32 round trips in HBM); looser tolerance
    Xb = X.astype(jnp.bfloat16)
    Yb = Y.astype(jnp.bfloat16)
    Xm3, Ym3 = jax.block_until_ready(mix_fn(Xb, Yb, perm, coeffs, mixadd=False))
    assert Xm3.dtype == jnp.bfloat16 and Ym3.dtype == jnp.bfloat16
    Xr3, Yr3 = mixup_ref(Xb.astype(jnp.float32), Yb.astype(jnp.float32), perm, coeffs, False)
    assert bool(jnp.allclose(Xm3.astype(jnp.float32), Xr3, atol=2e-2, rtol=2e-2))
    assert bool(jnp.allclose(Ym3.astype(jnp.float32), Yr3, atol=2e-2, rtol=2e-2))

    # end-to-end module-style call (RNG inside)
    outs = jax.block_until_ready(mixup_forward(key, X, Y, mix_beta=1.0, mixadd=False))
    assert len(outs) == 2 and outs[0].shape == X.shape and outs[1].shape == Y.shape
    assert bool(jnp.all(jnp.isfinite(outs[0]))) and bool(jnp.all(jnp.isfinite(outs[1])))

    print("KERNEL_OK")
</pallas_src>

<mosaic_0001>
module attributes {stable_mosaic.version = 11 : i64} {
  func.func @_mixup_x_kernel(%arg0: i32, %arg1: i32, %arg2: memref<2xi32, #tpu.memory_space<smem>>, %arg3: memref<2xf32, #tpu.memory_space<smem>>, %arg4: memref<1x8x128xf32, #tpu.memory_space<vmem>>, %arg5: memref<1x8x128xf32, #tpu.memory_space<vmem>>, %arg6: memref<1x8x128xf32, #tpu.memory_space<vmem>>) attributes {dimension_semantics = [#tpu.dimension_semantics<parallel>, #tpu.dimension_semantics<arbitrary>], iteration_bounds = array<i64: 2, 1>, scalar_prefetch = 1 : i64, scratch_operands = 0 : i64, tpu.core_type = #tpu.core_type<tc>, window_params = [{transform_indices = @transform_0, window_bounds = array<i64: 2>}, {transform_indices = @transform_1, window_bounds = array<i64: 1, 8, 128>}, {transform_indices = @transform_2, window_bounds = array<i64: 1, 8, 128>}, {transform_indices = @transform_3, window_bounds = array<i64: 1, 8, 128>}]} {
    %0 = arith.index_cast %arg0 : i32 to index
    %1 = memref.load %arg3[%0] : memref<2xf32, #tpu.memory_space<smem>>
    %c0 = arith.constant 0 : index
    %c0_0 = arith.constant 0 : index
    %c0_1 = arith.constant 0 : index
    %2 = vector.load %arg4[%c0, %c0_0, %c0_1] : memref<1x8x128xf32, #tpu.memory_space<vmem>>, vector<1x8x128xf32>
    %c0_2 = arith.constant 0 : index
    %c0_3 = arith.constant 0 : index
    %c0_4 = arith.constant 0 : index
    %3 = vector.load %arg5[%c0_2, %c0_3, %c0_4] : memref<1x8x128xf32, #tpu.memory_space<vmem>>, vector<1x8x128xf32>
    %4 = arith.subf %2, %3 : vector<1x8x128xf32>
    %5 = vector.broadcast %1 : f32 to vector<1x8x128xf32>
    %6 = arith.mulf %5, %4 : vector<1x8x128xf32>
    %7 = arith.addf %3, %6 : vector<1x8x128xf32>
    %c0_5 = arith.constant 0 : index
    %c0_6 = arith.constant 0 : index
    %c0_7 = arith.constant 0 : index
    %8 = vector.load %arg6[%c0_5, %c0_6, %c0_7] : memref<1x8x128xf32, #tpu.memory_space<vmem>>, vector<1x8x128xf32>
    tpu.vector_store %arg6[%c0_5, %c0_6, %c0_7], %7 {strides = array<i32>} : memref<1x8x128xf32, #tpu.memory_space<vmem>>, vector<1x8x128xf32>,
    return
  }
  func.func @transform_0(%arg0: i32, %arg1: i32, %arg2: memref<2xi32, #tpu.memory_space<smem>>) -> i32 {
    %c0_i32 = arith.constant 0 : i32
    %c0_i32_0 = arith.constant 0 : i32
    return %c0_i32 : i32
  }
  func.func @transform_1(%arg0: i32, %arg1: i32, %arg2: memref<2xi32, #tpu.memory_space<smem>>) -> (i32, i32, i32) {
    %c0_i32 = arith.constant 0 : i32
    %c0_i32_0 = arith.constant 0 : i32
    return %arg0, %arg1, %c0_i32 : i32, i32, i32
  }
  func.func @transform_2(%arg0: i32, %arg1: i32, %arg2: memref<2xi32, #tpu.memory_space<smem>>) -> (i32, i32, i32) {
    %0 = arith.index_cast %arg0 : i32 to index
    %1 = memref.load %arg2[%0] : memref<2xi32, #tpu.memory_space<smem>>
    %c0_i32 = arith.constant 0 : i32
    %c0_i32_0 = arith.constant 0 : i32
    return %1, %arg1, %c0_i32 : i32, i32, i32
  }
  func.func @transform_3(%arg0: i32, %arg1: i32, %arg2: memref<2xi32, #tpu.memory_space<smem>>) -> (i32, i32, i32) {
    %c0_i32 = arith.constant 0 : i32
    %c0_i32_0 = arith.constant 0 : i32
    return %arg0, %arg1, %c0_i32 : i32, i32, i32
  }
}

</mosaic_0001>

<llo_original>
// kernel: mixup_apply.1
$region0: #{mixup_apply.1}
  #allocation0 [shape = 'u32[]', space=smem, size = 0x4, offset = 0x4, fixed_abs, tag = 'smem constant byte address 0x4 - core index']
  #allocation1 [shape = 'u32[144,128]{1,0:T(1,128)}', space=vmem, size = 0x12000, scoped, tag = 'internal scratch']
  #allocation2 [shape = 's32[1]{0}', space=sflag, size = 0x4, scoped, tag = 'scoped memory for mixup_apply.1']
  #allocation3 [shape = 'u8[512]{0}', space=smem, size = 0x200, scoped, tag = 'prefetched SMEM operand 0']
  %s0 = inlined_call_operand.vmem [shape: s32[2], index: 0, kind: input, shape index: {}]
  %s1 = inlined_call_operand.vmem [shape: f32[2], index: 1, kind: input, shape index: {}]
  %s2 = inlined_call_operand.vmem [shape: f32[2,8,128], index: 2, kind: input, shape index: {}, may-alias: {2,3}]
  %s3 = inlined_call_operand.vmem [shape: f32[2,8,128], index: 3, kind: input, shape index: {}, may-alias: {2,3}]
  %s4 = inlined_call_operand.vmem [shape: f32[2,8,128], index: 4, kind: output, shape index: {}]
  %s5 = sld [smem:[#allocation0]]
  $region49: #{mixup_apply.1} parent=0
    _
  %s7 = ssub.s32 1, %s5
  %s8 = scalar_select 0, %s7, %s5
  %s9 = sshll.u32 %s0, 4
  %s10 = int_to_ptr.vmem [resolvable:$true] %s9
  %12 = dma.vmem_to_smem %s10, 16, [#allocation3], [#allocation2]
  %13 = dma.done [#allocation2], 16
  %14 = sfence
  $region1: #{mixup_apply.1} parent=0
    #allocation4 [shape = 'u8[512]{0}', space=smem, size = 0x200, scoped, tag = 'input window, operand 1, single buffered']
    #allocation5 [shape = 's32[2]{0}', space=sflag, size = 0x8, scoped, tag = 'scoped memory for mixup_apply.1']
    %15 = vsyncpa [#allocation5], 0
    loop: start=0, step=1, limit=4
    $region2: #{mixup_apply.1} parent=1 // loop_pre_header
      _
    $region3: #{mixup_apply.1} parent=1 // loop_header
      %s17 = sphi 0, %s21
      %p18 = scmp.ge.s32.totalorder %s17, 4
      %s24 = sphi 0, %s36
      %s25 = sphi 0, %s32
      %s26 = sphi 0, %s24
      %s27 = sphi 0, %s25
      %s28 = sphi 0, %s26
      %s29 = sphi 0, %s27
      %s37 = sphi 0, %s37
      %s39 = sphi 0, %s37
      %s40 = sphi 0, %s39
      %s54 = sphi 0, %s40
      %s62 = sphi 0, %s64
      %s65 = sphi 0, %s62
      %s66 = sphi 0, %s65
      %s82 = sphi 0, %s66
      %s92 = sphi 0, %s94
      %s95 = sphi 0, %s92
      %s96 = sphi 0, %s95
      %s112 = sphi 0, %s96
      %s120 = sphi 0, %s122
      %s123 = sphi 0, %s120
      %s124 = sphi 0, %s123
      %s140 = sphi 0, %s124
    $region4: #{mixup_apply.1} parent=1 // loop_header_branch
      %20 = sbr.rel (%p18) target = $region8
    $region5: #{mixup_apply.1} parent=1 // loop_body
      %s22 = ssub.s32 %s17, 1
      %s23 = ssub.s32 %s17, 2
      %s30 = sadd.s32 1, %s25
      %p31 = scmp.ge.s32.totalorder %s30, 1
      %s32 = scalar_select %p31, 0, %s30
      %s33 = sadd.s32 1, %s24
      %s34 = scalar_select %p31, %s33, %s24
      %p35 = scmp.ge.s32.totalorder %s34, 2
      %s36 = scalar_select %p35, 0, %s34
      %s38 = sadd.s32 %s37, 1
      %p41 = scmp.eq.s32.totalorder %s17, 1
      %p42 = scmp.ne.s32.totalorder %s37, %s39
      %p43 = scmp.eq.s32.totalorder %s17, 0
      %p44 = por %p42, %p43
      %p45 = scmp.ne.s32.totalorder %s37, %s39
      %p46 = scmp.eq.s32.totalorder %s22, 1
      %p47 = por %p45, %p46
      %p48 = scmp.ne.s32.totalorder %s39, %s40
      %p49 = scmp.eq.s32.totalorder %s22, 0
      %p50 = por %p48, %p49
      %p51 = scmp.ne.s32.totalorder %s39, %s40
      %p52 = scmp.eq.s32.totalorder %s23, 1
      %p53 = por %p51, %p52
      %p55 = scmp.ne.s32.totalorder %s40, %s54
      %p56 = scmp.eq.s32.totalorder %s23, 0
      %p57 = por %p55, %p56
      %s58 = ssub.s32 %s24, %s36
      %s59 = ssub.s32 %s25, %s32
      %s60 = sor.u32 %s58, %s59
      %p61 = scmp.eq.s32.totalorder %s60, 0
      %s63 = sadd.s32 %s62, 1
      %s64 = scalar_select %p61, %s62, %s63
      %p67 = pneg %p61
      %p68 = scmp.eq.s32.totalorder %s17, 1
      %p69 = por %p67, %p68
      %p70 = scmp.ne.s32.totalorder %s62, %s65
      %p71 = scmp.eq.s32.totalorder %s17, 0
      %p72 = por %p70, %p71
      %p73 = scmp.ne.s32.totalorder %s62, %s65
      %p74 = scmp.eq.s32.totalorder %s22, 1
      %p75 = por %p73, %p74
      %p76 = scmp.ne.s32.totalorder %s65, %s66
      %p77 = scmp.eq.s32.totalorder %s22, 0
      %p78 = por %p76, %p77
      %p79 = scmp.ne.s32.totalorder %s65, %s66
      %p80 = scmp.eq.s32.totalorder %s23, 1
      %p81 = por %p79, %p80
      %p83 = scmp.ne.s32.totalorder %s66, %s82
      %p84 = scmp.eq.s32.totalorder %s23, 0
      %p85 = por %p83, %p84
      %s86 = sld [smem:[#allocation3 + %s24]]
      %s87 = sld [smem:[#allocation3 + %s36]]
      %s88 = ssub.s32 %s86, %s87
      %s89 = ssub.s32 %s25, %s32
      %s90 = sor.u32 %s88, %s89
      %p91 = scmp.eq.s32.totalorder %s90, 0
      %s93 = sadd.s32 %s92, 1
      %s94 = scalar_select %p91, %s92, %s93
      %p97 = pneg %p91
      %p98 = scmp.eq.s32.totalorder %s17, 1
      %p99 = por %p97, %p98
      %p100 = scmp.ne.s32.totalorder %s92, %s95
      %p101 = scmp.eq.s32.totalorder %s17, 0
      %p102 = por %p100, %p101
      %p103 = scmp.ne.s32.totalorder %s92, %s95
      %p104 = scmp.eq.s32.totalorder %s22, 1
      %p105 = por %p103, %p104
      %p106 = scmp.ne.s32.totalorder %s95, %s96
      %p107 = scmp.eq.s32.totalorder %s22, 0
      %p108 = por %p106, %p107
      %p109 = scmp.ne.s32.totalorder %s95, %s96
      %p110 = scmp.eq.s32.totalorder %s23, 1
      %p111 = por %p109, %p110
      %p113 = scmp.ne.s32.totalorder %s96, %s112
      %p114 = scmp.eq.s32.totalorder %s23, 0
      %p115 = por %p113, %p114
      %s116 = ssub.s32 %s24, %s36
      %s117 = ssub.s32 %s25, %s32
      %s118 = sor.u32 %s116, %s117
      %p119 = scmp.eq.s32.totalorder %s118, 0
      %s121 = sadd.s32 %s120, 1
      %s122 = scalar_select %p119, %s120, %s121
      %p125 = pneg %p119
      %p126 = scmp.eq.s32.totalorder %s17, 1
      %p127 = por %p125, %p126
      %p128 = scmp.ne.s32.totalorder %s120, %s123
      %p129 = scmp.eq.s32.totalorder %s17, 0
      %p130 = por %p128, %p129
      %p131 = scmp.ne.s32.totalorder %s120, %s123
      %p132 = scmp.eq.s32.totalorder %s22, 1
      %p133 = por %p131, %p132
      %p134 = scmp.ne.s32.totalorder %s123, %s124
      %p135 = scmp.eq.s32.totalorder %s22, 0
      %p136 = por %p134, %p135
      %p137 = scmp.ne.s32.totalorder %s123, %s124
      %p138 = scmp.eq.s32.totalorder %s23, 1
      %p139 = por %p137, %p138
      %p141 = scmp.ne.s32.totalorder %s124, %s140
      %p142 = scmp.eq.s32.totalorder %s23, 0
      %p143 = por %p141, %p142
      %p144 = scmp.le.s32.totalorder 1, %s17
      %p145 = scmp.lt.s32.totalorder %s17, 3
      %p146 = pnand %p144, %p145
      %p147 = pneg %p146
      // Predicated region
      $region9: #{mixup_apply.1} parent=5 // pred_check
        _
      $region10: #{mixup_apply.1} parent=5 // pred_check_branch
        %149 = sbr.rel (%p146) target = $region12
      $region11: #{mixup_apply.1} parent=5 // pred_region
        %s150 = ssub.s32 %s17, 1
        // Predicated region
        $region13: #{mixup_apply.1} parent=11 // pred_check
          %p151 = pneg %p50
        $region14: #{mixup_apply.1} parent=11 // pred_check_branch
          %153 = sbr.rel (%p151) target = $region16
        $region15: #{mixup_apply.1} parent=11 // pred_region
          %s155 = ssub.s32 16, 16
          %156 = vsyncadd [#allocation5], %s155
          %s158 = sshll.u32 %s1, 4
          %s159 = int_to_ptr.vmem [resolvable:$true] %s158
          %161 = dma.vmem_to_smem %s159, 16, [#allocation4], [#allocation5]
        $region16: #{mixup_apply.1} parent=11 // pred_fallthru
          _
      $region12: #{mixup_apply.1} parent=5 // pred_fallthru
        _
      %p162 = scmp.lt.s32.totalorder %s17, 2
      // Predicated region
      $region17: #{mixup_apply.1} parent=5 // pred_check
        %p163 = pneg %p162
      $region18: #{mixup_apply.1} parent=5 // pred_check_branch
        %165 = sbr.rel (%p163) target = $region20
      $region19: #{mixup_apply.1} parent=5 // pred_region
        // Predicated region
        $region21: #{mixup_apply.1} parent=19 // pred_check
          %p166 = pneg %p72
        $region22: #{mixup_apply.1} parent=19 // pred_check_branch
          %168 = sbr.rel (%p166) target = $region24
        $region23: #{mixup_apply.1} parent=19 // pred_region
          %p169 = scmp.lt.s32.totalorder %s24, 1
          %s170 = scalar_select %p169, %s24, 1
          %p171 = scmp.lt.s32.totalorder %s25, 0
          %s172 = scalar_select %p171, %s25, 0
          %s173 = sadd.s32 %s172, %s170
          %s174 = smul.addr %s173, 8
          %s175 = scalar_lea.vmem %s2, %s174
        $region24: #{mixup_apply.1} parent=19 // pred_fallthru
          _
        // Predicated region
        $region25: #{mixup_apply.1} parent=19 // pred_check
          %p176 = pneg %p102
        $region26: #{mixup_apply.1} parent=19 // pred_check_branch
          %178 = sbr.rel (%p176) target = $region28
        $region27: #{mixup_apply.1} parent=19 // pred_region
          %s179 = sld [smem:[#allocation3 + %s24]]
          %p180 = scmp.lt.s32.totalorder %s179, 1
          %s181 = scalar_select %p180, %s179, 1
          %p182 = scmp.lt.s32.totalorder %s25, 0
          %s183 = scalar_select %p182, %s25, 0
          %s184 = sadd.s32 %s183, %s181
          %s185 = smul.addr %s184, 8
          %s186 = scalar_lea.vmem %s3, %s185
          %s187 = sld [smem:[#allocation3 + %s24]]
        $region28: #{mixup_apply.1} parent=19 // pred_fallthru
          _
      $region20: #{mixup_apply.1} parent=5 // pred_fallthru
        _
      %p188 = scmp.le.s32.totalorder 1, %s17
      %p189 = scmp.lt.s32.totalorder %s17, 3
      %p190 = pnand %p188, %p189
      %p191 = pneg %p190
      // Predicated region
      $region29: #{mixup_apply.1} parent=5 // pred_check
        _
      $region30: #{mixup_apply.1} parent=5 // pred_check_branch
        %193 = sbr.rel (%p190) target = $region32
      $region31: #{mixup_apply.1} parent=5 // pred_region
        %s194 = ssub.s32 %s17, 1
        // Predicated region
        $region33: #{mixup_apply.1} parent=31 // pred_check
          %p195 = pneg %p50
        $region34: #{mixup_apply.1} parent=31 // pred_check_branch
          %197 = sbr.rel (%p195) target = $region36
        $region35: #{mixup_apply.1} parent=31 // pred_region
          %198 = dma.done [#allocation5], 16
        $region36: #{mixup_apply.1} parent=31 // pred_fallthru
          _
        %199 = sfence
        %p200 = pneg %p50
        %p201 = pneg %p47
        %p202 = scmp.lt.s32.totalorder %s26, 1
        %s203 = scalar_select %p202, %s26, 1
        %p204 = scmp.lt.s32.totalorder %s27, 0
        %s205 = scalar_select %p204, %s27, 0
        %s206 = sadd.s32 %s205, %s203
        %s207 = smul.addr %s206, 8
        %s208 = scalar_lea.vmem %s2, %s207
        %p209 = pneg %p78
        %p210 = pneg %p75
        %s211 = sld [smem:[#allocation3 + %s26]]
        %p212 = scmp.lt.s32.totalorder %s211, 1
        %s213 = scalar_select %p212, %s211, 1
        %p214 = scmp.lt.s32.totalorder %s27, 0
        %s215 = scalar_select %p214, %s27, 0
        %s216 = sadd.s32 %s215, %s213
        %s217 = smul.addr %s216, 8
        %s218 = scalar_lea.vmem %s3, %s217
        %p219 = pneg %p108
        %p220 = pneg %p105
        %p221 = pneg %p136
        %p222 = pneg %p133
        %p223 = scmp.lt.s32.totalorder %s26, 1
        %s224 = scalar_select %p223, %s26, 1
        %p225 = scmp.lt.s32.totalorder %s27, 0
        %s226 = scalar_select %p225, %s27, 0
        %s227 = sadd.s32 %s226, %s224
        %s228 = smul.addr %s227, 8
        %s229 = scalar_lea.vmem %s4, %s228
        %p230 = scmp.lt.s32.totalorder %s26, 1
        %s231 = scalar_select %p230, %s26, 1
        %p232 = scmp.lt.s32.totalorder %s27, 0
        %s233 = scalar_select %p232, %s27, 0
        %s234 = sadd.s32 %s233, %s231
        %s235 = smul.addr %s234, 8
        %s236 = scalar_lea.vmem %s2, %s235
        %s237 = sld [smem:[#allocation3 + %s26]]
        %p238 = scmp.lt.s32.totalorder %s237, 1
        %s239 = scalar_select %p238, %s237, 1
        %p240 = scmp.lt.s32.totalorder %s27, 0
        %s241 = scalar_select %p240, %s27, 0
        %s242 = sadd.s32 %s241, %s239
        %s243 = smul.addr %s242, 8
        %s244 = scalar_lea.vmem %s3, %s243
        %s245 = sld [smem:[#allocation3 + %s26]]
        %p246 = scmp.lt.s32.totalorder %s26, 1
        %s247 = scalar_select %p246, %s26, 1
        %p248 = scmp.lt.s32.totalorder %s27, 0
        %s249 = scalar_select %p248, %s27, 0
        %s250 = sadd.s32 %s249, %s247
        %s251 = smul.addr %s250, 8
        %s252 = scalar_lea.vmem %s4, %s251
        %s253 = sld [smem:[#allocation4 + %s26]]
        %v254 = vld [vmem:[%s236] sm:$0xff]
        %v255 = vld [vmem:[%s244] sm:$0xff]
        %v256 = vsub.f32 %v254, %v255
        %v257 = vstv %s253
        %v258 = vmul.f32 %v257, %v256
        %v259 = vadd.f32 %v255, %v258
        %260 = vst [vmem:[%s252] sm:$0xff] %v259
        %p261 = scmp.lt.s32.totalorder %s26, 1
        %s262 = scalar_select %p261, %s26, 1
        %p263 = scmp.lt.s32.totalorder %s27, 0
        %s264 = scalar_select %p263, %s27, 0
        %s265 = sadd.s32 %s264, %s262
        %s266 = smul.addr %s265, 8
        %s267 = scalar_lea.vmem %s4, %s266
        // Predicated region
        $region37: #{mixup_apply.1} parent=31 // pred_check
          %p268 = pneg %p133
        $region38: #{mixup_apply.1} parent=31 // pred_check_branch
          %270 = sbr.rel (%p268) target = $region40
        $region39: #{mixup_apply.1} parent=31 // pred_region
          _
        $region40: #{mixup_apply.1} parent=31 // pred_fallthru
          _
      $region32: #{mixup_apply.1} parent=5 // pred_fallthru
        _
      %p271 = scmp.le.s32.totalorder 2, %s17
      // Predicated region
      $region41: #{mixup_apply.1} parent=5 // pred_check
        %p272 = pneg %p271
      $region42: #{mixup_apply.1} parent=5 // pred_check_branch
        %274 = sbr.rel (%p272) target = $region44
      $region43: #{mixup_apply.1} parent=5 // pred_region
        %s275 = ssub.s32 %s17, 2
        // Predicated region
        $region45: #{mixup_apply.1} parent=43 // pred_check
          %p276 = pneg %p139
        $region46: #{mixup_apply.1} parent=43 // pred_check_branch
          %278 = sbr.rel (%p276) target = $region48
        $region47: #{mixup_apply.1} parent=43 // pred_region
          %p279 = scmp.lt.s32.totalorder %s28, 1
          %s280 = scalar_select %p279, %s28, 1
          %p281 = scmp.lt.s32.totalorder %s29, 0
          %s282 = scalar_select %p281, %s29, 0
          %s283 = sadd.s32 %s282, %s280
          %s284 = smul.addr %s283, 8
          %s285 = scalar_lea.vmem %s4, %s284
        $region48: #{mixup_apply.1} parent=43 // pred_fallthru
          _
      $region44: #{mixup_apply.1} parent=5 // pred_fallthru
        _
    $region6: #{mixup_apply.1} parent=1 // loop_footer
      %s21 = sadd.s32 1, %s17
    $region7: #{mixup_apply.1} parent=1 // loop_footer_branch
      %16 = sbr.rel target = $region3
    $region8: #{mixup_apply.1} parent=1 // loop_exit
      _
    %286 = vsyncpa [#allocation5], 1
    %s287 = scalar_lea.sflag [#allocation5], 1
    %288 = vsyncpa %s287, 1

</llo_original>
